<compile_context>
chip_gen: v5e
topology: v5e:2x2
jax: 0.10.0
libtpu: 0.0.40
codegen_flags: <defaults>
</compile_context>

<pallas_src>
import jax
import jax.numpy as jnp
from jax import lax
from jax.experimental import pallas as pl
from jax.experimental.pallas import tpu as pltpu


def _round_up(x, m):
    return ((x + m - 1) // m) * m


def _pdvf_kernel(state_ref, env_ref, pembT_ref,
                 w1s_ref, w1e_ref, b1_ref,
                 w2_ref, b2_ref,
                 wm_ref, bm_ref,
                 out_ref):
    """One batch tile, transposed orientation (batch on the lane axis)."""
    # Contract the last dim of both operands: h1T[h, b] = sum_d w1[h, d] x[b, d]
    dn = (((1,), (1,)), ((), ()))

    # fc1 (split GEMM -- no concatenated input) + ReLU
    h1 = lax.dot_general(w1s_ref[...], state_ref[...], dn,
                         preferred_element_type=jnp.float32)
    h1 = h1 + lax.dot_general(w1e_ref[...], env_ref[...], dn,
                              preferred_element_type=jnp.float32)
    h1 = jnp.maximum(h1 + b1_ref[...], 0.0)                      # [H, TB] f32

    # fc2 + tanh
    h2 = jnp.dot(w2_ref[...], h1.astype(w2_ref.dtype),
                 preferred_element_type=jnp.float32)
    h2 = jnp.tanh(h2 + b2_ref[...])                              # [H, TB] f32

    # mat_head: row (j*p + k) of `m` holds M[b, j, k] (row-major flattening)
    m = jnp.dot(wm_ref[...], h2.astype(wm_ref.dtype),
                preferred_element_type=jnp.float32)
    m = m + bm_ref[...]                                          # [p*p, TB]

    p = pembT_ref[...]                                           # [p, TB] f32
    pe = p.shape[0]
    tb = p.shape[1]

    # quad[b] = sum_k ( sum_j p[j, b] * M[b, j, k] )^2
    # Tiny static unroll; stays as flat [1, TB] lane vectors on the VPU --
    # no reshape, no cross-lane reduce inside the kernel.
    quad = jnp.zeros((1, tb), jnp.float32)
    for k in range(pe):
        vk = jnp.zeros((1, tb), jnp.float32)
        for j in range(pe):
            vk = vk + p[j:j + 1, :] * m[j * pe + k:j * pe + k + 1, :]
        quad = quad + vk * vk

    out_ref[...] = quad                                          # [1, TB]


def pdvf_forward(state, env_emb, policy_emb, params, *,
                 tile_b=1024, matmul_dtype=jnp.float32):
    """PDVF.forward(state, env_emb, policy_emb) -> val of shape [B]."""
    B, sd = state.shape
    ed = env_emb.shape[1]
    pe = policy_emb.shape[1]
    H = params["b1"].shape[0]
    f32 = jnp.float32

    # Batch tile: multiple of 128 (lane-dense output), shrunk for tiny B.
    tile_b = min(tile_b, _round_up(max(B, 1), 128))
    b_pad = _round_up(B, tile_b)
    pad = b_pad - B

    state_p = jnp.pad(state.astype(matmul_dtype), ((0, pad), (0, 0)))
    env_p = jnp.pad(env_emb.astype(matmul_dtype), ((0, pad), (0, 0)))
    pembT = jnp.pad(policy_emb.astype(f32), ((0, pad), (0, 0))).T   # [pe, Bp]

    # PyTorch layout [out, in]; fc1 split so no cat(state, env_emb) is built.
    w1 = params["w1"]
    w1s = w1[:, :sd].astype(matmul_dtype)
    w1e = w1[:, sd:].astype(matmul_dtype)
    w2 = params["w2"].astype(matmul_dtype)
    wm = params["wm"].astype(matmul_dtype)
    b1 = params["b1"].astype(f32)[:, None]
    b2 = params["b2"].astype(f32)[:, None]
    bm = params["bm"].astype(f32)[:, None]

    grid = (b_pad // tile_b,)

    def batched(d):              # [B_pad, d] tiled along the batch rows
        return pl.BlockSpec((tile_b, d), lambda i: (i, 0))

    def pinned(shape):           # whole (small) array, same block every step
        return pl.BlockSpec(shape, lambda i: (0, 0))

    out = pl.pallas_call(
        _pdvf_kernel,
        out_shape=jax.ShapeDtypeStruct((1, b_pad), f32),
        grid_spec=pltpu.PrefetchScalarGridSpec(
            num_scalar_prefetch=0,
            grid=grid,
            in_specs=[
                batched(sd),                                   # state
                batched(ed),                                   # env_emb
                pl.BlockSpec((pe, tile_b), lambda i: (0, i)),  # policy_emb^T
                pinned((H, sd)), pinned((H, ed)), pinned((H, 1)),  # fc1
                pinned((H, H)), pinned((H, 1)),                    # fc2
                pinned((pe * pe, H)), pinned((pe * pe, 1)),        # mat_head
            ],
            out_specs=pl.BlockSpec((1, tile_b), lambda i: (0, i)),
        ),
        compiler_params=pltpu.CompilerParams(
            dimension_semantics=("parallel",)),
    )(state_p, env_p, pembT, w1s, w1e, b1, w2, b2, wm, bm)

    return out[0, :B]   # val: shape [B]


def init_pdvf_params(key, state_dim, env_emb_dim, hidden_dim, policy_emb_dim=2):
    """Deterministic orthogonal init matching PDVF.reset_parameters().

    Weights kept in PyTorch nn.Linear layout [out_features, in_features].
    """
    num_inputs = state_dim + env_emb_dim
    relu_gain = float(jnp.sqrt(2.0))   # nn.init.calculate_gain('relu')
    ortho = jax.nn.initializers.orthogonal()
    k1, k2, km = jax.random.split(key, 3)
    return {
        "w1": relu_gain * ortho(k1, (hidden_dim, num_inputs), jnp.float32),
        "b1": jnp.zeros((hidden_dim,), jnp.float32),
        "w2": relu_gain * ortho(k2, (hidden_dim, hidden_dim), jnp.float32),
        "b2": jnp.zeros((hidden_dim,), jnp.float32),
        "wm": ortho(km, (policy_emb_dim * policy_emb_dim, hidden_dim), jnp.float32),
        "bm": jnp.zeros((policy_emb_dim * policy_emb_dim,), jnp.float32),
    }


if __name__ == "__main__":
    # Small shapes consistent with the module.
    B = 8
    state_dim = 12
    env_emb_dim = 20
    hidden_dim = 32
    policy_emb_dim = 2

    key = jax.random.PRNGKey(0)
    kp, ks, ke, kpe = jax.random.split(key, 4)

    params = init_pdvf_params(kp, state_dim, env_emb_dim, hidden_dim,
                              policy_emb_dim)

    state = jax.random.normal(ks, (B, state_dim), jnp.float32)
    env_emb = jax.random.normal(ke, (B, env_emb_dim), jnp.float32)
    policy_emb = jax.random.normal(kpe, (B, policy_emb_dim), jnp.float32)

    val = pdvf_forward(state, env_emb, policy_emb, params)
    jax.block_until_ready(val)

    # Pure-JAX reference (PyTorch-layout weights => x @ W.T + b).
    x = jnp.concatenate([state, env_emb], axis=1)
    h = jnp.maximum(x @ params["w1"].T + params["b1"], 0.0)
    h = jnp.tanh(h @ params["w2"].T + params["b2"])
    m = (h @ params["wm"].T + params["bm"]).reshape(B, policy_emb_dim,
                                                    policy_emb_dim)
    mat = jnp.einsum("ijk,ilk->ijl", m, m)
    ref = jnp.einsum("ij,ijk,ik->i", policy_emb, mat, policy_emb)
    assert jnp.allclose(val, ref, atol=1e-4, rtol=1e-4), (val, ref)

    print("KERNEL_OK")
</pallas_src>

<mosaic_0001>
module attributes {stable_mosaic.version = 11 : i64} {
  func.func @_pdvf_kernel(%arg0: i32, %arg1: memref<128x12xf32, #tpu.memory_space<vmem>>, %arg2: memref<128x20xf32, #tpu.memory_space<vmem>>, %arg3: memref<2x128xf32, #tpu.memory_space<vmem>>, %arg4: memref<32x12xf32, #tpu.memory_space<vmem>>, %arg5: memref<32x20xf32, #tpu.memory_space<vmem>>, %arg6: memref<32x1xf32, #tpu.memory_space<vmem>>, %arg7: memref<32x32xf32, #tpu.memory_space<vmem>>, %arg8: memref<32x1xf32, #tpu.memory_space<vmem>>, %arg9: memref<4x32xf32, #tpu.memory_space<vmem>>, %arg10: memref<4x1xf32, #tpu.memory_space<vmem>>, %arg11: memref<1x128xf32, #tpu.memory_space<vmem>>) attributes {dimension_semantics = [#tpu.dimension_semantics<parallel>], iteration_bounds = array<i64: 1>, scalar_prefetch = 0 : i64, scratch_operands = 0 : i64, tpu.core_type = #tpu.core_type<tc>, window_params = [{transform_indices = @transform_0, window_bounds = array<i64: 128, 12>}, {transform_indices = @transform_1, window_bounds = array<i64: 128, 20>}, {transform_indices = @transform_2, window_bounds = array<i64: 2, 128>}, {pipeline_mode = #tpu.pipeline_mode<synchronous>, transform_indices = @transform_3, window_bounds = array<i64: 32, 12>}, {pipeline_mode = #tpu.pipeline_mode<synchronous>, transform_indices = @transform_4, window_bounds = array<i64: 32, 20>}, {pipeline_mode = #tpu.pipeline_mode<synchronous>, transform_indices = @transform_5, window_bounds = array<i64: 32, 1>}, {pipeline_mode = #tpu.pipeline_mode<synchronous>, transform_indices = @transform_6, window_bounds = array<i64: 32, 32>}, {pipeline_mode = #tpu.pipeline_mode<synchronous>, transform_indices = @transform_7, window_bounds = array<i64: 32, 1>}, {pipeline_mode = #tpu.pipeline_mode<synchronous>, transform_indices = @transform_8, window_bounds = array<i64: 4, 32>}, {pipeline_mode = #tpu.pipeline_mode<synchronous>, transform_indices = @transform_9, window_bounds = array<i64: 4, 1>}, {transform_indices = @transform_10, window_bounds = array<i64: 1, 128>}]} {
    %c0 = arith.constant 0 : index
    %c0_0 = arith.constant 0 : index
    %0 = vector.load %arg4[%c0, %c0_0] : memref<32x12xf32, #tpu.memory_space<vmem>>, vector<32x12xf32>
    %c0_1 = arith.constant 0 : index
    %c0_2 = arith.constant 0 : index
    %1 = vector.load %arg1[%c0_1, %c0_2] : memref<128x12xf32, #tpu.memory_space<vmem>>, vector<128x12xf32>
    %cst = arith.constant dense<0.000000e+00> : vector<32x128xf32>
    %2 = tpu.matmul %0, %1, %cst {dimension_numbers = #tpu.dot_dimension_numbers<[1], [1], [0], [0], [0, 0, 1, 0], [], []>} : vector<32x12xf32>, vector<128x12xf32>, vector<32x128xf32> -> vector<32x128xf32>
    %c0_3 = arith.constant 0 : index
    %c0_4 = arith.constant 0 : index
    %3 = vector.load %arg5[%c0_3, %c0_4] : memref<32x20xf32, #tpu.memory_space<vmem>>, vector<32x20xf32>
    %c0_5 = arith.constant 0 : index
    %c0_6 = arith.constant 0 : index
    %4 = vector.load %arg2[%c0_5, %c0_6] : memref<128x20xf32, #tpu.memory_space<vmem>>, vector<128x20xf32>
    %cst_7 = arith.constant dense<0.000000e+00> : vector<32x128xf32>
    %5 = tpu.matmul %3, %4, %cst_7 {dimension_numbers = #tpu.dot_dimension_numbers<[1], [1], [0], [0], [0, 0, 1, 0], [], []>} : vector<32x20xf32>, vector<128x20xf32>, vector<32x128xf32> -> vector<32x128xf32>
    %6 = arith.addf %2, %5 : vector<32x128xf32>
    %c0_8 = arith.constant 0 : index
    %c0_9 = arith.constant 0 : index
    %7 = vector.load %arg6[%c0_8, %c0_9] : memref<32x1xf32, #tpu.memory_space<vmem>>, vector<32x1xf32>
    %8 = vector.broadcast %7 : vector<32x1xf32> to vector<32x128xf32>
    %9 = arith.addf %6, %8 : vector<32x128xf32>
    %cst_10 = arith.constant 0.000000e+00 : f32
    %10 = vector.broadcast %cst_10 : f32 to vector<32x128xf32>
    %11 = arith.maximumf %9, %10 : vector<32x128xf32>
    %c0_11 = arith.constant 0 : index
    %c0_12 = arith.constant 0 : index
    %12 = vector.load %arg7[%c0_11, %c0_12] : memref<32x32xf32, #tpu.memory_space<vmem>>, vector<32x32xf32>
    %cst_13 = arith.constant dense<0.000000e+00> : vector<32x128xf32>
    %13 = tpu.matmul %12, %11, %cst_13 {dimension_numbers = #tpu.dot_dimension_numbers<[1], [0], [0], [1], [0, 0, 1, 1], [], []>} : vector<32x32xf32>, vector<32x128xf32>, vector<32x128xf32> -> vector<32x128xf32>
    %c0_14 = arith.constant 0 : index
    %c0_15 = arith.constant 0 : index
    %14 = vector.load %arg8[%c0_14, %c0_15] : memref<32x1xf32, #tpu.memory_space<vmem>>, vector<32x1xf32>
    %15 = vector.broadcast %14 : vector<32x1xf32> to vector<32x128xf32>
    %16 = arith.addf %13, %15 : vector<32x128xf32>
    %17 = math.tanh %16 : vector<32x128xf32>
    %c0_16 = arith.constant 0 : index
    %c0_17 = arith.constant 0 : index
    %18 = vector.load %arg9[%c0_16, %c0_17] : memref<4x32xf32, #tpu.memory_space<vmem>>, vector<4x32xf32>
    %cst_18 = arith.constant dense<0.000000e+00> : vector<4x128xf32>
    %19 = tpu.matmul %18, %17, %cst_18 {dimension_numbers = #tpu.dot_dimension_numbers<[1], [0], [0], [1], [0, 0, 1, 1], [], []>} : vector<4x32xf32>, vector<32x128xf32>, vector<4x128xf32> -> vector<4x128xf32>
    %c0_19 = arith.constant 0 : index
    %c0_20 = arith.constant 0 : index
    %20 = vector.load %arg10[%c0_19, %c0_20] : memref<4x1xf32, #tpu.memory_space<vmem>>, vector<4x1xf32>
    %21 = vector.broadcast %20 : vector<4x1xf32> to vector<4x128xf32>
    %22 = arith.addf %19, %21 : vector<4x128xf32>
    %c0_21 = arith.constant 0 : index
    %c0_22 = arith.constant 0 : index
    %23 = vector.load %arg3[%c0_21, %c0_22] : memref<2x128xf32, #tpu.memory_space<vmem>>, vector<2x128xf32>
    %cst_23 = arith.constant 0.000000e+00 : f32
    %24 = vector.broadcast %cst_23 : f32 to vector<1x128xf32>
    %cst_24 = arith.constant 0.000000e+00 : f32
    %25 = vector.broadcast %cst_24 : f32 to vector<1x128xf32>
    %26 = vector.extract_strided_slice %23 {offsets = [0, 0], sizes = [1, 128], strides = [1, 1]} : vector<2x128xf32> to vector<1x128xf32>
    %27 = vector.extract_strided_slice %22 {offsets = [0, 0], sizes = [1, 128], strides = [1, 1]} : vector<4x128xf32> to vector<1x128xf32>
    %28 = arith.mulf %26, %27 : vector<1x128xf32>
    %29 = arith.addf %25, %28 : vector<1x128xf32>
    %30 = vector.extract_strided_slice %23 {offsets = [1, 0], sizes = [1, 128], strides = [1, 1]} : vector<2x128xf32> to vector<1x128xf32>
    %31 = vector.extract_strided_slice %22 {offsets = [2, 0], sizes = [1, 128], strides = [1, 1]} : vector<4x128xf32> to vector<1x128xf32>
    %32 = arith.mulf %30, %31 : vector<1x128xf32>
    %33 = arith.addf %29, %32 : vector<1x128xf32>
    %34 = arith.mulf %33, %33 : vector<1x128xf32>
    %35 = arith.addf %24, %34 : vector<1x128xf32>
    %cst_25 = arith.constant 0.000000e+00 : f32
    %36 = vector.broadcast %cst_25 : f32 to vector<1x128xf32>
    %37 = vector.extract_strided_slice %23 {offsets = [0, 0], sizes = [1, 128], strides = [1, 1]} : vector<2x128xf32> to vector<1x128xf32>
    %38 = vector.extract_strided_slice %22 {offsets = [1, 0], sizes = [1, 128], strides = [1, 1]} : vector<4x128xf32> to vector<1x128xf32>
    %39 = arith.mulf %37, %38 : vector<1x128xf32>
    %40 = arith.addf %36, %39 : vector<1x128xf32>
    %41 = vector.extract_strided_slice %23 {offsets = [1, 0], sizes = [1, 128], strides = [1, 1]} : vector<2x128xf32> to vector<1x128xf32>
    %42 = vector.extract_strided_slice %22 {offsets = [3, 0], sizes = [1, 128], strides = [1, 1]} : vector<4x128xf32> to vector<1x128xf32>
    %43 = arith.mulf %41, %42 : vector<1x128xf32>
    %44 = arith.addf %40, %43 : vector<1x128xf32>
    %45 = arith.mulf %44, %44 : vector<1x128xf32>
    %46 = arith.addf %35, %45 : vector<1x128xf32>
    %c0_26 = arith.constant 0 : index
    %c0_27 = arith.constant 0 : index
    %47 = vector.load %arg11[%c0_26, %c0_27] : memref<1x128xf32, #tpu.memory_space<vmem>>, vector<1x128xf32>
    tpu.vector_store %arg11[%c0_26, %c0_27], %46 {strides = array<i32>} : memref<1x128xf32, #tpu.memory_space<vmem>>, vector<1x128xf32>,
    return
  }
  func.func @transform_0(%arg0: i32) -> (i32, i32) {
    %c0_i32 = arith.constant 0 : i32
    %c0_i32_0 = arith.constant 0 : i32
    return %arg0, %c0_i32 : i32, i32
  }
  func.func @transform_1(%arg0: i32) -> (i32, i32) {
    %c0_i32 = arith.constant 0 : i32
    %c0_i32_0 = arith.constant 0 : i32
    return %arg0, %c0_i32 : i32, i32
  }
  func.func @transform_2(%arg0: i32) -> (i32, i32) {
    %c0_i32 = arith.constant 0 : i32
    %c0_i32_0 = arith.constant 0 : i32
    return %c0_i32, %arg0 : i32, i32
  }
  func.func @transform_3(%arg0: i32) -> (i32, i32) {
    %c0_i32 = arith.constant 0 : i32
    %c0_i32_0 = arith.constant 0 : i32
    %c0_i32_1 = arith.constant 0 : i32
    return %c0_i32, %c0_i32_0 : i32, i32
  }
  func.func @transform_4(%arg0: i32) -> (i32, i32) {
    %c0_i32 = arith.constant 0 : i32
    %c0_i32_0 = arith.constant 0 : i32
    %c0_i32_1 = arith.constant 0 : i32
    return %c0_i32, %c0_i32_0 : i32, i32
  }
  func.func @transform_5(%arg0: i32) -> (i32, i32) {
    %c0_i32 = arith.constant 0 : i32
    %c0_i32_0 = arith.constant 0 : i32
    %c0_i32_1 = arith.constant 0 : i32
    return %c0_i32, %c0_i32_0 : i32, i32
  }
  func.func @transform_6(%arg0: i32) -> (i32, i32) {
    %c0_i32 = arith.constant 0 : i32
    %c0_i32_0 = arith.constant 0 : i32
    %c0_i32_1 = arith.constant 0 : i32
    return %c0_i32, %c0_i32_0 : i32, i32
  }
  func.func @transform_7(%arg0: i32) -> (i32, i32) {
    %c0_i32 = arith.constant 0 : i32
    %c0_i32_0 = arith.constant 0 : i32
    %c0_i32_1 = arith.constant 0 : i32
    return %c0_i32, %c0_i32_0 : i32, i32
  }
  func.func @transform_8(%arg0: i32) -> (i32, i32) {
    %c0_i32 = arith.constant 0 : i32
    %c0_i32_0 = arith.constant 0 : i32
    %c0_i32_1 = arith.constant 0 : i32
    return %c0_i32, %c0_i32_0 : i32, i32
  }
  func.func @transform_9(%arg0: i32) -> (i32, i32) {
    %c0_i32 = arith.constant 0 : i32
    %c0_i32_0 = arith.constant 0 : i32
    %c0_i32_1 = arith.constant 0 : i32
    return %c0_i32, %c0_i32_0 : i32, i32
  }
  func.func @transform_10(%arg0: i32) -> (i32, i32) {
    %c0_i32 = arith.constant 0 : i32
    %c0_i32_0 = arith.constant 0 : i32
    return %c0_i32, %arg0 : i32, i32
  }
}

</mosaic_0001>

<llo_original>
// kernel: tpu_custom_call.1
$region0: #{tpu_custom_call.1}
  #allocation0 [shape = 'u32[]', space=smem, size = 0x4, offset = 0x4, fixed_abs, tag = 'smem constant byte address 0x4 - core index']
  #allocation1 [shape = 'u32[72,128]{1,0:T(1,128)}', space=vmem, size = 0x9000, scoped, tag = 'internal scratch']
  %s0 = inlined_call_operand.vmem [shape: f32[128,12], index: 0, kind: input, shape index: {}]
  %s1 = inlined_call_operand.vmem [shape: f32[128,20], index: 1, kind: input, shape index: {}]
  %s2 = inlined_call_operand.vmem [shape: f32[2,128], index: 2, kind: input, shape index: {}]
  %s3 = inlined_call_operand.vmem [shape: f32[32,12], index: 3, kind: input, shape index: {}]
  %s4 = inlined_call_operand.vmem [shape: f32[32,20], index: 4, kind: input, shape index: {}]
  %s5 = inlined_call_operand.vmem [shape: f32[32,1], index: 5, kind: input, shape index: {}]
  %s6 = inlined_call_operand.vmem [shape: f32[32,32], index: 6, kind: input, shape index: {}]
  %s7 = inlined_call_operand.vmem [shape: f32[32,1], index: 7, kind: input, shape index: {}]
  %s8 = inlined_call_operand.vmem [shape: f32[4,32], index: 8, kind: input, shape index: {}]
  %s9 = inlined_call_operand.vmem [shape: f32[4,1], index: 9, kind: input, shape index: {}]
  %s10 = inlined_call_operand.hbm [shape: f32[1,128], index: 10, kind: output, shape index: {}]
  %s11 = sld [smem:[#allocation0]]
  $region50: #{tpu_custom_call.1} parent=0
    _
  %s13 = ssub.s32 1, %s11
  %s14 = scalar_select 0, %s13, %s11
  $region1: #{tpu_custom_call.1} parent=0
    #allocation2 [shape = 'u8[512]{0}', space=vmem, size = 0x400, scoped, tag = 'output window, operand 0, single buffered']
    #allocation3 [shape = 's32[1]{0}', space=sflag, size = 0x4, scoped, tag = 'scoped memory for tpu_custom_call.1']
    %15 = vsyncpa [#allocation3], 0
    // Predicated region
    $region2: #{tpu_custom_call.1} parent=1 // pred_check
      _
    $region3: #{tpu_custom_call.1} parent=1 // pred_check_branch
      %17 = sbr.rel (0) target = $region5
    $region4: #{tpu_custom_call.1} parent=1 // pred_region
      _
    $region5: #{tpu_custom_call.1} parent=1 // pred_fallthru
      _
    // Predicated region
    $region6: #{tpu_custom_call.1} parent=1 // pred_check
      _
    $region7: #{tpu_custom_call.1} parent=1 // pred_check_branch
      %19 = sbr.rel (0) target = $region9
    $region8: #{tpu_custom_call.1} parent=1 // pred_region
      _
    $region9: #{tpu_custom_call.1} parent=1 // pred_fallthru
      _
    // Predicated region
    $region10: #{tpu_custom_call.1} parent=1 // pred_check
      _
    $region11: #{tpu_custom_call.1} parent=1 // pred_check_branch
      %21 = sbr.rel (0) target = $region13
    $region12: #{tpu_custom_call.1} parent=1 // pred_region
      _
    $region13: #{tpu_custom_call.1} parent=1 // pred_fallthru
      _
    // Predicated region
    $region14: #{tpu_custom_call.1} parent=1 // pred_check
      _
    $region15: #{tpu_custom_call.1} parent=1 // pred_check_branch
      %23 = sbr.rel (0) target = $region17
    $region16: #{tpu_custom_call.1} parent=1 // pred_region
      _
    $region17: #{tpu_custom_call.1} parent=1 // pred_fallthru
      _
    // Predicated region
    $region18: #{tpu_custom_call.1} parent=1 // pred_check
      _
    $region19: #{tpu_custom_call.1} parent=1 // pred_check_branch
      %25 = sbr.rel (0) target = $region21
    $region20: #{tpu_custom_call.1} parent=1 // pred_region
      _
    $region21: #{tpu_custom_call.1} parent=1 // pred_fallthru
      _
    // Predicated region
    $region22: #{tpu_custom_call.1} parent=1 // pred_check
      _
    $region23: #{tpu_custom_call.1} parent=1 // pred_check_branch
      %27 = sbr.rel (0) target = $region25
    $region24: #{tpu_custom_call.1} parent=1 // pred_region
      _
    $region25: #{tpu_custom_call.1} parent=1 // pred_fallthru
      _
    // Predicated region
    $region26: #{tpu_custom_call.1} parent=1 // pred_check
      _
    $region27: #{tpu_custom_call.1} parent=1 // pred_check_branch
      %29 = sbr.rel (0) target = $region29
    $region28: #{tpu_custom_call.1} parent=1 // pred_region
      _
    $region29: #{tpu_custom_call.1} parent=1 // pred_fallthru
      _
    // Predicated region
    $region30: #{tpu_custom_call.1} parent=1 // pred_check
      _
    $region31: #{tpu_custom_call.1} parent=1 // pred_check_branch
      %31 = sbr.rel (0) target = $region33
    $region32: #{tpu_custom_call.1} parent=1 // pred_region
      _
    $region33: #{tpu_custom_call.1} parent=1 // pred_fallthru
      _
    // Predicated region
    $region34: #{tpu_custom_call.1} parent=1 // pred_check
      _
    $region35: #{tpu_custom_call.1} parent=1 // pred_check_branch
      %33 = sbr.rel (0) target = $region37
    $region36: #{tpu_custom_call.1} parent=1 // pred_region
      _
    $region37: #{tpu_custom_call.1} parent=1 // pred_fallthru
      _
    // Predicated region
    $region38: #{tpu_custom_call.1} parent=1 // pred_check
      _
    $region39: #{tpu_custom_call.1} parent=1 // pred_check_branch
      %35 = sbr.rel (0) target = $region41
    $region40: #{tpu_custom_call.1} parent=1 // pred_region
      _
    $region41: #{tpu_custom_call.1} parent=1 // pred_fallthru
      _
    %v36 = vld [vmem:[%s3] sm:$0xff]
    %v37 = vld [vmem:[%s3 + $0x8] sm:$0xff]
    %v38 = vld [vmem:[%s3 + $0x10] sm:$0xff]
    %v39 = vld [vmem:[%s3 + $0x18] sm:$0xff]
    %v40 = vld [vmem:[%s0] sm:$0xff]
    %v41 = vld [vmem:[%s0 + $0x8] sm:$0xff]
    %v42 = vld [vmem:[%s0 + $0x10] sm:$0xff]
    %v43 = vld [vmem:[%s0 + $0x18] sm:$0xff]
    %v44 = vld [vmem:[%s0 + $0x20] sm:$0xff]
    %v45 = vld [vmem:[%s0 + $0x28] sm:$0xff]
    %v46 = vld [vmem:[%s0 + $0x30] sm:$0xff]
    %v47 = vld [vmem:[%s0 + $0x38] sm:$0xff]
    %v48 = vld [vmem:[%s0 + $0x40] sm:$0xff]
    %v49 = vld [vmem:[%s0 + $0x48] sm:$0xff]
    %v50 = vld [vmem:[%s0 + $0x50] sm:$0xff]
    %v51 = vld [vmem:[%s0 + $0x58] sm:$0xff]
    %v52 = vld [vmem:[%s0 + $0x60] sm:$0xff]
    %v53 = vld [vmem:[%s0 + $0x68] sm:$0xff]
    %v54 = vld [vmem:[%s0 + $0x70] sm:$0xff]
    %v55 = vld [vmem:[%s0 + $0x78] sm:$0xff]
    %v56 = vld [vmem:[%s4] sm:$0xff]
    %v57 = vld [vmem:[%s4 + $0x8] sm:$0xff]
    %v58 = vld [vmem:[%s4 + $0x10] sm:$0xff]
    %v59 = vld [vmem:[%s4 + $0x18] sm:$0xff]
    %v60 = vld [vmem:[%s1] sm:$0xff]
    %v61 = vld [vmem:[%s1 + $0x8] sm:$0xff]
    %v62 = vld [vmem:[%s1 + $0x10] sm:$0xff]
    %v63 = vld [vmem:[%s1 + $0x18] sm:$0xff]
    %v64 = vld [vmem:[%s1 + $0x20] sm:$0xff]
    %v65 = vld [vmem:[%s1 + $0x28] sm:$0xff]
    %v66 = vld [vmem:[%s1 + $0x30] sm:$0xff]
    %v67 = vld [vmem:[%s1 + $0x38] sm:$0xff]
    %v68 = vld [vmem:[%s1 + $0x40] sm:$0xff]
    %v69 = vld [vmem:[%s1 + $0x48] sm:$0xff]
    %v70 = vld [vmem:[%s1 + $0x50] sm:$0xff]
    %v71 = vld [vmem:[%s1 + $0x58] sm:$0xff]
    %v72 = vld [vmem:[%s1 + $0x60] sm:$0xff]
    %v73 = vld [vmem:[%s1 + $0x68] sm:$0xff]
    %v74 = vld [vmem:[%s1 + $0x70] sm:$0xff]
    %v75 = vld [vmem:[%s1 + $0x78] sm:$0xff]
    %vm76 = vcmask 162816
    %v78 = vsel %vm76, %v56, 0
    %v81 = vsel %vm76, %v57, 0
    %v84 = vsel %vm76, %v58, 0
    %v87 = vsel %vm76, %v59, 0
    %v90 = vsel %vm76, %v60, 0
    %v93 = vsel %vm76, %v61, 0
    %v96 = vsel %vm76, %v62, 0
    %v99 = vsel %vm76, %v63, 0
    %v102 = vsel %vm76, %v64, 0
    %v105 = vsel %vm76, %v65, 0
    %v108 = vsel %vm76, %v66, 0
    %v111 = vsel %vm76, %v67, 0
    %v114 = vsel %vm76, %v68, 0
    %v117 = vsel %vm76, %v69, 0
    %v120 = vsel %vm76, %v70, 0
    %v123 = vsel %vm76, %v71, 0
    %v126 = vsel %vm76, %v72, 0
    %v129 = vsel %vm76, %v73, 0
    %v132 = vsel %vm76, %v74, 0
    %v135 = vsel %vm76, %v75, 0
    %137 = vmatpush.xpose.msra.mxu0 %v135
    %138 = vmatpush.xpose.msra.mxu0 %v132
    %139 = vmatpush.xpose.msra.mxu0 %v129
    %140 = vmatpush.xpose.msra.mxu0 %v126
    %141 = vmatpush.xpose.msra.mxu0 %v123
    %142 = vmatpush.xpose.msra.mxu0 %v120
    %143 = vmatpush.xpose.msra.mxu0 %v117
    %144 = vmatpush.xpose.msra.mxu0 %v114
    %145 = vmatpush.xpose.msra.mxu0 %v111
    %146 = vmatpush.xpose.msra.mxu0 %v108
    %147 = vmatpush.xpose.msra.mxu0 %v105
    %148 = vmatpush.xpose.msra.mxu0 %v102
    %149 = vmatpush.xpose.msra.mxu0 %v99
    %150 = vmatpush.xpose.msra.mxu0 %v96
    %151 = vmatpush.xpose.msra.mxu0 %v93
    %152 = vmatpush.xpose.msra.mxu0 %v90
    %153 = vmatmul.f32.gmra.mxu0 %v78
    %v154 = vpop.f32.mrf.mxu0
    %v155 = vadd.f32 0.0, %v154
    %156 = vmatmul.f32.gmra.mxu0 %v81
    %v157 = vpop.f32.mrf.mxu0
    %v158 = vadd.f32 0.0, %v157
    %159 = vmatmul.f32.gmra.mxu0 %v84
    %v160 = vpop.f32.mrf.mxu0
    %v161 = vadd.f32 0.0, %v160
    %162 = vmatmul.f32.gmra.mxu0 %v87
    %v163 = vpop.f32.mrf.mxu0
    %v164 = vadd.f32 0.0, %v163
    %165 = vdwg.mxu0
    %vm166 = vcmask 97280
    %v168 = vsel %vm166, %v36, 0
    %v171 = vsel %vm166, %v37, 0
    %v174 = vsel %vm166, %v38, 0
    %v177 = vsel %vm166, %v39, 0
    %v180 = vsel %vm166, %v40, 0
    %v183 = vsel %vm166, %v41, 0
    %v186 = vsel %vm166, %v42, 0
    %v189 = vsel %vm166, %v43, 0
    %v192 = vsel %vm166, %v44, 0
    %v195 = vsel %vm166, %v45, 0
    %v198 = vsel %vm166, %v46, 0
    %v201 = vsel %vm166, %v47, 0
    %v204 = vsel %vm166, %v48, 0
    %v207 = vsel %vm166, %v49, 0
    %v210 = vsel %vm166, %v50, 0
    %v213 = vsel %vm166, %v51, 0
    %v216 = vsel %vm166, %v52, 0
    %v219 = vsel %vm166, %v53, 0
    %v222 = vsel %vm166, %v54, 0
    %v225 = vsel %vm166, %v55, 0
    %227 = vmatpush.xpose.msra.mxu0 %v225
    %228 = vmatpush.xpose.msra.mxu0 %v222
    %229 = vmatpush.xpose.msra.mxu0 %v219
    %230 = vmatpush.xpose.msra.mxu0 %v216
    %231 = vmatpush.xpose.msra.mxu0 %v213
    %232 = vmatpush.xpose.msra.mxu0 %v210
    %233 = vmatpush.xpose.msra.mxu0 %v207
    %234 = vmatpush.xpose.msra.mxu0 %v204
    %235 = vmatpush.xpose.msra.mxu0 %v201
    %236 = vmatpush.xpose.msra.mxu0 %v198
    %237 = vmatpush.xpose.msra.mxu0 %v195
    %238 = vmatpush.xpose.msra.mxu0 %v192
    %239 = vmatpush.xpose.msra.mxu0 %v189
    %240 = vmatpush.xpose.msra.mxu0 %v186
    %241 = vmatpush.xpose.msra.mxu0 %v183
    %242 = vmatpush.xpose.msra.mxu0 %v180
    %243 = vmatmul.f32.gmra.mxu0 %v168
    %v244 = vpop.f32.mrf.mxu0
    %v245 = vadd.f32 %v155, %v244
    %246 = vmatmul.f32.gmra.mxu0 %v171
    %v247 = vpop.f32.mrf.mxu0
    %v248 = vadd.f32 %v158, %v247
    %249 = vmatmul.f32.gmra.mxu0 %v174
    %v250 = vpop.f32.mrf.mxu0
    %v251 = vadd.f32 %v161, %v250
    %252 = vmatmul.f32.gmra.mxu0 %v177
    %v253 = vpop.f32.mrf.mxu0
    %v254 = vadd.f32 %v164, %v253
    %255 = vdwg.mxu0
    %v256 = vld [vmem:[%s5] sm:$0xff]
    %v257 = vld [vmem:[%s5 + $0x8] sm:$0xff]
    %v258 = vld [vmem:[%s5 + $0x10] sm:$0xff]
    %v259 = vld [vmem:[%s5 + $0x18] sm:$0xff]
    %261 = vset.pattern.permute.xlu0 0
    %262 = vperm.xlu0 %261, %v256
    %v263 = vpop.permute.xlu0 %262
    %266 = vset.pattern.permute.xlu0 0
    %267 = vperm.xlu0 %266, %v257
    %v268 = vpop.permute.xlu0 %267
    %271 = vset.pattern.permute.xlu0 0
    %272 = vperm.xlu0 %271, %v258
    %v273 = vpop.permute.xlu0 %272
    %276 = vset.pattern.permute.xlu0 0
    %277 = vperm.xlu0 %276, %v259
    %v278 = vpop.permute.xlu0 %277
    %v280 = vadd.f32 %v245, %v263
    %v281 = vadd.f32 %v248, %v268
    %v282 = vadd.f32 %v251, %v273
    %v283 = vadd.f32 %v254, %v278
    %v284 = vmax.f32 %v280, 0.0
    %v285 = vmax.f32 %v281, 0.0
    %v286 = vmax.f32 %v282, 0.0
    %v287 = vmax.f32 %v283, 0.0
    %v288 = vld [vmem:[%s6] sm:$0xff]
    %v289 = vld [vmem:[%s6 + $0x8] sm:$0xff]
    %v290 = vld [vmem:[%s6 + $0x10] sm:$0xff]
    %v291 = vld [vmem:[%s6 + $0x18] sm:$0xff]
    %v292 = vld [vmem:[%s7] sm:$0xff]
    %v293 = vld [vmem:[%s7 + $0x8] sm:$0xff]
    %v294 = vld [vmem:[%s7 + $0x10] sm:$0xff]
    %v295 = vld [vmem:[%s7 + $0x18] sm:$0xff]
    %297 = vset.pattern.permute.xlu0 0
    %298 = vperm.xlu0 %297, %v292
    %v299 = vpop.permute.xlu0 %298
    %302 = vset.pattern.permute.xlu0 0
    %303 = vperm.xlu0 %302, %v293
    %v304 = vpop.permute.xlu0 %303
    %307 = vset.pattern.permute.xlu0 0
    %308 = vperm.xlu0 %307, %v294
    %v309 = vpop.permute.xlu0 %308
    %312 = vset.pattern.permute.xlu0 0
    %313 = vperm.xlu0 %312, %v295
    %v314 = vpop.permute.xlu0 %313
    %vm316 = vcmask 261120
    %v318 = vsel %vm316, %v288, 0
    %v321 = vsel %vm316, %v289, 0
    %v324 = vsel %vm316, %v290, 0
    %v327 = vsel %vm316, %v291, 0
    %329 = vmatpush.msra.mxu0 0.0
    %330 = vmatpush.msra.mxu0 0.0
    %331 = vmatpush.msra.mxu0 0.0
    %332 = vmatpush.msra.mxu0 0.0
    %333 = vmatpush.msra.mxu0 0.0
    %334 = vmatpush.msra.mxu0 0.0
    %335 = vmatpush.msra.mxu0 0.0
    %336 = vmatpush.msra.mxu0 0.0
    %337 = vmatpush.msra.mxu0 0.0
    %338 = vmatpush.msra.mxu0 0.0
    %339 = vmatpush.msra.mxu0 0.0
    %340 = vmatpush.msra.mxu0 0.0
    %341 = vmatpush.msra.mxu0 %v287
    %342 = vmatpush.msra.mxu0 %v286
    %343 = vmatpush.msra.mxu0 %v285
    %344 = vmatpush.msra.mxu0 %v284
    %345 = vmatmul.f32.gmra.mxu0 %v318
    %v346 = vpop.f32.mrf.mxu0
    %v347 = vadd.f32 %v299, %v346
    %348 = vmatmul.f32.gmra.mxu0 %v321
    %v349 = vpop.f32.mrf.mxu0
    %v350 = vadd.f32 %v304, %v349
    %351 = vmatmul.f32.gmra.mxu0 %v324
    %v352 = vpop.f32.mrf.mxu0
    %v353 = vadd.f32 %v309, %v352
    %354 = vmatmul.f32.gmra.mxu0 %v327
    %v355 = vpop.f32.mrf.mxu0
    %v356 = vadd.f32 %v314, %v355
    %357 = vdwg.mxu0
    %v358 = vtanh.pop %v347
    %v359 = vtanh.pop %v350
    %v360 = vtanh.pop %v353
    %v361 = vtanh.pop %v356
    %v362 = vld [vmem:[%s8] sm:$0xf]
    %v363 = vld [vmem:[%s9] sm:$0xf]
    %365 = vset.pattern.permute.xlu0 0
    %366 = vperm.xlu0 %365, %v363
    %v367 = vpop.permute.xlu0 %366
    %v370 = vsel %vm316, %v362, 0
    %372 = vmatpush.msra.mxu0 0.0
    %373 = vmatpush.msra.mxu0 0.0
    %374 = vmatpush.msra.mxu0 0.0
    %375 = vmatpush.msra.mxu0 0.0
    %376 = vmatpush.msra.mxu0 0.0
    %377 = vmatpush.msra.mxu0 0.0
    %378 = vmatpush.msra.mxu0 0.0
    %379 = vmatpush.msra.mxu0 0.0
    %380 = vmatpush.msra.mxu0 0.0
    %381 = vmatpush.msra.mxu0 0.0
    %382 = vmatpush.msra.mxu0 0.0
    %383 = vmatpush.msra.mxu0 0.0
    %384 = vmatpush.msra.mxu0 %v361
    %385 = vmatpush.msra.mxu0 %v360
    %386 = vmatpush.msra.mxu0 %v359
    %387 = vmatpush.msra.mxu0 %v358
    %388 = vmatmul.f32.gmra.mxu0 %v370
    %v389 = vpop.f32.mrf.mxu0
    %v390 = vadd.f32 %v367, %v389
    %391 = vdwg.mxu0
    %v392 = vld [vmem:[%s2] sm:$0x3]
    %v393 = vmul.f32 %v392, %v390
    %v394 = vadd.f32 %v393, 0.0
    %v396 = vrot.slane %v390, 1
    %v398 = vmul.f32 %v392, %v396
    %v400 = vrot.slane %v398, 1
    %v402 = vadd.f32 %v394, %v400
    %v403 = vmul.f32 %v402, %v402
    %v404 = vadd.f32 %v403, 0.0
    %v405 = vadd.f32 %v398, 0.0
    %v406 = vrot.slane %v390, 2
    %v408 = vmul.f32 %v392, %v406
    %v410 = vrot.slane %v408, 1
    %v412 = vadd.f32 %v405, %v410
    %v413 = vmul.f32 %v412, %v412
    %v414 = vadd.f32 %v404, %v413
    %415 = vst [vmem:[#allocation2] sm:$0x1] %v414
    // Predicated region
    $region42: #{tpu_custom_call.1} parent=1 // pred_check
      _
    $region43: #{tpu_custom_call.1} parent=1 // pred_check_branch
      %417 = sbr.rel (0) target = $region45
    $region44: #{tpu_custom_call.1} parent=1 // pred_region
      %419 = vsyncadd [#allocation3], 0
      %s421 = sshll.u32 [#allocation2], 4
      %s422 = int_to_ptr.vmem [resolvable:$true] %s421
      %s423 = sshll.u32 %s10, 4
      %s424 = int_to_ptr.hbm [resolvable:$true] %s423
      %426 = dma.vmem_to_hbm [thread:$0]  %s422, 16, %s424, [#allocation3]
    $region45: #{tpu_custom_call.1} parent=1 // pred_fallthru
      _
    // Predicated region
    $region46: #{tpu_custom_call.1} parent=1 // pred_check
      _
    $region47: #{tpu_custom_call.1} parent=1 // pred_check_branch
      %428 = sbr.rel (0) target = $region49
    $region48: #{tpu_custom_call.1} parent=1 // pred_region
      %430 = dma.done [#allocation3], 16
    $region49: #{tpu_custom_call.1} parent=1 // pred_fallthru
      _
    %431 = vsyncpa [#allocation3], 1

</llo_original>
